<compile_context>
chip_gen: v5e
topology: v5e:2x2
jax: 0.10.0
libtpu: 0.0.40
codegen_flags: <defaults>
</compile_context>

<pallas_src>
import functools

import jax
import jax.numpy as jnp
from jax.experimental import pallas as pl
from jax.experimental.pallas import tpu as pltpu


def _round_up(x, m):
    return ((x + m - 1) // m) * m


# ---------------------------------------------------------------------------
# Fused multi-layer kernel:  a_{i+1} = relu(W_i @ a_i + b_i), last layer no ReLU
# ---------------------------------------------------------------------------
def _fused_mlp_kernel(*refs, bias_offsets, vpu_max_k, mxu_dot_dtype):
    # refs = (x_ref, w_0, ..., w_{n-1}, b_packed_ref, o_ref)
    x_ref = refs[0]
    o_ref = refs[-1]
    b_ref = refs[-2]
    w_refs = refs[1:-2]
    num_layers = len(w_refs)

    a = x_ref[...].astype(jnp.float32)                       # (C_in, TL)
    for i, w_ref in enumerate(w_refs):
        co, ci = w_ref.shape
        w = w_ref[...]                                        # (co, ci) f32
        off = bias_offsets[i]
        b = b_ref[off:off + co, :]                            # (co, 1)  f32, static slice

        if ci <= vpu_max_k:
            # Tiny contraction (e.g. Cin=4): K/256 MXU utilization ~1.6%, so
            # compute it as `ci` unrolled broadcast-FMAs on the VPU and keep
            # the MXU push slot free for the wider layers.
            acc = w[:, 0:1] * a[0:1, :]
            for k in range(1, ci):
                acc = acc + w[:, k:k + 1] * a[k:k + 1, :]
            a = acc + b
        else:
            if mxu_dot_dtype is not None:
                # Optional single-pass MXU inputs (e.g. bf16): ~2-3x fewer
                # vmatmul pushes, ~1e-3 relative accuracy (f32 accumulator).
                wd = w.astype(mxu_dot_dtype)
                ad = a.astype(mxu_dot_dtype)
            else:
                wd, ad = w, a
            a = jnp.dot(wd, ad, preferred_element_type=jnp.float32) + b

        if i < num_layers - 1:
            a = jnp.maximum(a, 0.0)                           # fused ReLU

    o_ref[...] = a.astype(o_ref.dtype)                        # (C_out, TL), lane-dense


# ---------------------------------------------------------------------------
# Tile selection: VMEM-budget-derived, 128-multiple tiles, ragged tail masked
# ---------------------------------------------------------------------------
def _choose_l_tile(N, L, per_col_bytes, vmem_budget_bytes, max_tile):
    budget_cols = max(128, vmem_budget_bytes // per_col_bytes)
    cap = min(max_tile, budget_cols)
    cap = max(128, (cap // 128) * 128)
    if L <= cap:
        tl = L            # one tile covers L; block == full dim is always legal
    else:
        tl = cap          # fixed 128-multiple tile; Pallas masks the ragged tail
    # Keep >= 4 total grid steps (both v7x TensorCores busy, still able to
    # double-buffer) — but only when per-step work stays substantial.
    while tl >= 1024 and N * pl.cdiv(L, tl) < 4:
        tl = max(512, (tl // 2 // 128) * 128)
    return tl


def mlp_forward(params, x_ncl, *, max_tile=8192,
                vmem_budget_bytes=32 * 1024 * 1024,
                vmem_limit_bytes=48 * 1024 * 1024,
                vpu_max_k=8, mxu_dot_dtype=None):
    """x_ncl: (N, C_in, L) -> (N, C_out, L), matching the PyTorch forward."""
    N, Cin, L = x_ncl.shape
    Cout = params[-1][0].shape[0]
    assert params[0][0].shape[1] == Cin

    # Per-L-column VMEM estimate (f32): double-buffered x & out plus an upper
    # bound on the fused-chain intermediates.  Weights/biases are tiny and
    # resident, ignored here but covered by the budget headroom.
    dims = [Cin] + [w.shape[0] for w, _ in params]
    per_col_bytes = 4 * (2 * (dims[0] + dims[-1]) + sum(dims))
    TL = _choose_l_tile(N, L, per_col_bytes, vmem_budget_bytes, max_tile)
    grid = (N, pl.cdiv(L, TL))

    # Pack all biases into one VMEM buffer with 8-sublane-aligned row offsets.
    couts = [w.shape[0] for w, _ in params]
    padded = [_round_up(c, 8) for c in couts]
    offsets = [0]
    for p in padded[:-1]:
        offsets.append(offsets[-1] + p)
    P = sum(padded)
    pieces = [jnp.pad(b.astype(jnp.float32), (0, p - b.shape[0]))
              for (_, b), p in zip(params, padded)]
    b_packed = jnp.concatenate(pieces).reshape(P, 1)

    kernel = functools.partial(
        _fused_mlp_kernel,
        bias_offsets=tuple(int(o) for o in offsets),
        vpu_max_k=vpu_max_k,
        mxu_dot_dtype=mxu_dot_dtype,
    )

    # x: one (batch, L-tile) block per grid step; channels full on sublanes.
    in_specs = [pl.BlockSpec((None, Cin, TL), lambda n, l: (n, 0, l))]
    args = [x_ncl]
    # Weights: full blocks, constant index_map -> fetched once, stay in VMEM.
    for w, _ in params:
        co, ci = w.shape
        in_specs.append(pl.BlockSpec((co, ci), lambda n, l: (0, 0)))
        args.append(w.astype(jnp.float32))
    # Packed biases: single resident buffer.
    in_specs.append(pl.BlockSpec((P, 1), lambda n, l: (0, 0)))
    args.append(b_packed)

    out_specs = pl.BlockSpec((None, Cout, TL), lambda n, l: (n, 0, l))

    return pl.pallas_call(
        kernel,
        out_shape=jax.ShapeDtypeStruct((N, Cout, L), x_ncl.dtype),
        grid=grid,
        in_specs=in_specs,
        out_specs=out_specs,
        compiler_params=pltpu.CompilerParams(
            dimension_semantics=("parallel", "parallel"),
            vmem_limit_bytes=vmem_limit_bytes),
    )(*args)


# ---------------------------------------------------------------------------
# Parameter init mimicking PyTorch Conv1d(k=1):  W (out, in), b (out,)
# ---------------------------------------------------------------------------
def init_mlp_params(key, input_dim, hidden_dim, output_dim, num_layers):
    h = [hidden_dim] * (num_layers - 1)
    dims_in = [input_dim] + h
    dims_out = h + [output_dim]
    params = []
    for n, k in zip(dims_in, dims_out):
        key, kw, kb = jax.random.split(key, 3)
        bound = 1.0 / jnp.sqrt(jnp.float32(n))
        w = jax.random.uniform(kw, (k, n), jnp.float32, -bound, bound)
        b = jax.random.uniform(kb, (k,), jnp.float32, -bound, bound)
        params.append((w, b))
    return params


# ---------------------------------------------------------------------------
# Pure-JAX reference (sanity check)
# ---------------------------------------------------------------------------
def mlp_reference(params, x_ncl):
    a = x_ncl
    n = len(params)
    for i, (w, b) in enumerate(params):
        a = jnp.einsum('oi,bil->bol', w, a) + b[None, :, None]
        if i < n - 1:
            a = jnp.maximum(a, 0.0)
    return a


if __name__ == "__main__":
    # MLP(input_dim=4, hidden_dim=32, output_dim=8, num_layers=3)
    input_dim, hidden_dim, output_dim, num_layers = 4, 32, 8, 3

    key = jax.random.PRNGKey(0)
    key, kx = jax.random.split(key)
    params = init_mlp_params(key, input_dim, hidden_dim, output_dim, num_layers)

    # Primary check: small shapes consistent with the module (N=2, C=4, L=16).
    N, L = 2, 16
    x = jax.random.normal(kx, (N, input_dim, L), jnp.float32)
    out = jax.block_until_ready(mlp_forward(params, x))
    ref = jax.block_until_ready(mlp_reference(params, x))
    assert out.shape == (N, output_dim, L), out.shape
    assert jnp.allclose(out, ref, atol=1e-4, rtol=1e-4), "mismatch vs reference (L=16)"

    # Lane-dense multi-tile path (TL=512 after the >=4-steps split, grid (2,2)).
    key, kx2 = jax.random.split(key)
    L2 = 1024
    x2 = jax.random.normal(kx2, (N, input_dim, L2), jnp.float32)
    out2 = jax.block_until_ready(mlp_forward(params, x2))
    ref2 = jax.block_until_ready(mlp_reference(params, x2))
    assert out2.shape == (N, output_dim, L2), out2.shape
    assert jnp.allclose(out2, ref2, atol=1e-4, rtol=1e-4), "mismatch vs reference (L=1024)"

    # Ragged-tail path: L not a multiple of TL -> cdiv grid + masked last block.
    key, kx3 = jax.random.split(key)
    L3 = 650
    x3 = jax.random.normal(kx3, (N, input_dim, L3), jnp.float32)
    out3 = jax.block_until_ready(mlp_forward(params, x3, max_tile=512))
    ref3 = jax.block_until_ready(mlp_reference(params, x3))
    assert out3.shape == (N, output_dim, L3), out3.shape
    assert jnp.allclose(out3, ref3, atol=1e-4, rtol=1e-4), "mismatch vs reference (L=650)"

    print("KERNEL_OK")
</pallas_src>

<mosaic_0001>
module attributes {stable_mosaic.version = 11 : i64} {
  func.func @_fused_mlp_kernel(%arg0: i32, %arg1: i32, %arg2: memref<1x4x16xf32, #tpu.memory_space<vmem>>, %arg3: memref<32x4xf32, #tpu.memory_space<vmem>>, %arg4: memref<32x32xf32, #tpu.memory_space<vmem>>, %arg5: memref<8x32xf32, #tpu.memory_space<vmem>>, %arg6: memref<72x1xf32, #tpu.memory_space<vmem>>, %arg7: memref<1x8x16xf32, #tpu.memory_space<vmem>>) attributes {dimension_semantics = [#tpu.dimension_semantics<parallel>, #tpu.dimension_semantics<parallel>], iteration_bounds = array<i64: 2, 1>, scalar_prefetch = 0 : i64, scratch_operands = 0 : i64, tpu.core_type = #tpu.core_type<tc>, window_params = [{transform_indices = @transform_0, window_bounds = array<i64: 1, 4, 16>}, {pipeline_mode = #tpu.pipeline_mode<synchronous>, transform_indices = @transform_1, window_bounds = array<i64: 32, 4>}, {pipeline_mode = #tpu.pipeline_mode<synchronous>, transform_indices = @transform_2, window_bounds = array<i64: 32, 32>}, {pipeline_mode = #tpu.pipeline_mode<synchronous>, transform_indices = @transform_3, window_bounds = array<i64: 8, 32>}, {pipeline_mode = #tpu.pipeline_mode<synchronous>, transform_indices = @transform_4, window_bounds = array<i64: 72, 1>}, {transform_indices = @transform_5, window_bounds = array<i64: 1, 8, 16>}]} {
    %c0 = arith.constant 0 : index
    %c0_0 = arith.constant 0 : index
    %c0_1 = arith.constant 0 : index
    %0 = vector.load %arg2[%c0, %c0_0, %c0_1] : memref<1x4x16xf32, #tpu.memory_space<vmem>>, vector<1x4x16xf32>
    %1 = vector.shape_cast %0 : vector<1x4x16xf32> to vector<4x16xf32>
    %c0_2 = arith.constant 0 : index
    %c0_3 = arith.constant 0 : index
    %2 = vector.load %arg3[%c0_2, %c0_3] : memref<32x4xf32, #tpu.memory_space<vmem>>, vector<32x4xf32>
    %c0_4 = arith.constant 0 : index
    %c0_5 = arith.constant 0 : index
    %3 = vector.load %arg6[%c0_4, %c0_5] : memref<72x1xf32, #tpu.memory_space<vmem>>, vector<32x1xf32>
    %4 = vector.extract_strided_slice %2 {offsets = [0, 0], sizes = [32, 1], strides = [1, 1]} : vector<32x4xf32> to vector<32x1xf32>
    %5 = vector.extract_strided_slice %1 {offsets = [0, 0], sizes = [1, 16], strides = [1, 1]} : vector<4x16xf32> to vector<1x16xf32>
    %6 = vector.broadcast %4 : vector<32x1xf32> to vector<32x16xf32>
    %7 = vector.broadcast %5 : vector<1x16xf32> to vector<32x16xf32>
    %8 = arith.mulf %6, %7 : vector<32x16xf32>
    %9 = vector.extract_strided_slice %2 {offsets = [0, 1], sizes = [32, 1], strides = [1, 1]} : vector<32x4xf32> to vector<32x1xf32>
    %10 = vector.extract_strided_slice %1 {offsets = [1, 0], sizes = [1, 16], strides = [1, 1]} : vector<4x16xf32> to vector<1x16xf32>
    %11 = vector.broadcast %9 : vector<32x1xf32> to vector<32x16xf32>
    %12 = vector.broadcast %10 : vector<1x16xf32> to vector<32x16xf32>
    %13 = arith.mulf %11, %12 : vector<32x16xf32>
    %14 = arith.addf %8, %13 : vector<32x16xf32>
    %15 = vector.extract_strided_slice %2 {offsets = [0, 2], sizes = [32, 1], strides = [1, 1]} : vector<32x4xf32> to vector<32x1xf32>
    %16 = vector.extract_strided_slice %1 {offsets = [2, 0], sizes = [1, 16], strides = [1, 1]} : vector<4x16xf32> to vector<1x16xf32>
    %17 = vector.broadcast %15 : vector<32x1xf32> to vector<32x16xf32>
    %18 = vector.broadcast %16 : vector<1x16xf32> to vector<32x16xf32>
    %19 = arith.mulf %17, %18 : vector<32x16xf32>
    %20 = arith.addf %14, %19 : vector<32x16xf32>
    %21 = vector.extract_strided_slice %2 {offsets = [0, 3], sizes = [32, 1], strides = [1, 1]} : vector<32x4xf32> to vector<32x1xf32>
    %22 = vector.extract_strided_slice %1 {offsets = [3, 0], sizes = [1, 16], strides = [1, 1]} : vector<4x16xf32> to vector<1x16xf32>
    %23 = vector.broadcast %21 : vector<32x1xf32> to vector<32x16xf32>
    %24 = vector.broadcast %22 : vector<1x16xf32> to vector<32x16xf32>
    %25 = arith.mulf %23, %24 : vector<32x16xf32>
    %26 = arith.addf %20, %25 : vector<32x16xf32>
    %27 = vector.broadcast %3 : vector<32x1xf32> to vector<32x16xf32>
    %28 = arith.addf %26, %27 : vector<32x16xf32>
    %cst = arith.constant 0.000000e+00 : f32
    %29 = vector.broadcast %cst : f32 to vector<32x16xf32>
    %30 = arith.maximumf %28, %29 : vector<32x16xf32>
    %c0_6 = arith.constant 0 : index
    %c0_7 = arith.constant 0 : index
    %31 = vector.load %arg4[%c0_6, %c0_7] : memref<32x32xf32, #tpu.memory_space<vmem>>, vector<32x32xf32>
    %c32 = arith.constant 32 : index
    %c0_8 = arith.constant 0 : index
    %32 = vector.load %arg6[%c32, %c0_8] : memref<72x1xf32, #tpu.memory_space<vmem>>, vector<32x1xf32>
    %cst_9 = arith.constant dense<0.000000e+00> : vector<32x16xf32>
    %33 = tpu.matmul %31, %30, %cst_9 {dimension_numbers = #tpu.dot_dimension_numbers<[1], [0], [0], [1], [0, 0, 1, 1], [], []>} : vector<32x32xf32>, vector<32x16xf32>, vector<32x16xf32> -> vector<32x16xf32>
    %34 = vector.broadcast %32 : vector<32x1xf32> to vector<32x16xf32>
    %35 = arith.addf %33, %34 : vector<32x16xf32>
    %cst_10 = arith.constant 0.000000e+00 : f32
    %36 = vector.broadcast %cst_10 : f32 to vector<32x16xf32>
    %37 = arith.maximumf %35, %36 : vector<32x16xf32>
    %c0_11 = arith.constant 0 : index
    %c0_12 = arith.constant 0 : index
    %38 = vector.load %arg5[%c0_11, %c0_12] : memref<8x32xf32, #tpu.memory_space<vmem>>, vector<8x32xf32>
    %c64 = arith.constant 64 : index
    %c0_13 = arith.constant 0 : index
    %39 = vector.load %arg6[%c64, %c0_13] : memref<72x1xf32, #tpu.memory_space<vmem>>, vector<8x1xf32>
    %cst_14 = arith.constant dense<0.000000e+00> : vector<8x16xf32>
    %40 = tpu.matmul %38, %37, %cst_14 {dimension_numbers = #tpu.dot_dimension_numbers<[1], [0], [0], [1], [0, 0, 1, 1], [], []>} : vector<8x32xf32>, vector<32x16xf32>, vector<8x16xf32> -> vector<8x16xf32>
    %41 = vector.broadcast %39 : vector<8x1xf32> to vector<8x16xf32>
    %42 = arith.addf %40, %41 : vector<8x16xf32>
    %c0_15 = arith.constant 0 : index
    %c0_16 = arith.constant 0 : index
    %c0_17 = arith.constant 0 : index
    %43 = vector.load %arg7[%c0_15, %c0_16, %c0_17] : memref<1x8x16xf32, #tpu.memory_space<vmem>>, vector<1x8x16xf32>
    %44 = vector.shape_cast %43 : vector<1x8x16xf32> to vector<8x16xf32>
    %45 = vector.shape_cast %42 : vector<8x16xf32> to vector<1x8x16xf32>
    tpu.vector_store %arg7[%c0_15, %c0_16, %c0_17], %45 {strides = array<i32>} : memref<1x8x16xf32, #tpu.memory_space<vmem>>, vector<1x8x16xf32>,
    return
  }
  func.func @transform_0(%arg0: i32, %arg1: i32) -> (i32, i32, i32) {
    %c0_i32 = arith.constant 0 : i32
    %c0_i32_0 = arith.constant 0 : i32
    return %arg0, %c0_i32, %arg1 : i32, i32, i32
  }
  func.func @transform_1(%arg0: i32, %arg1: i32) -> (i32, i32) {
    %c0_i32 = arith.constant 0 : i32
    %c0_i32_0 = arith.constant 0 : i32
    %c0_i32_1 = arith.constant 0 : i32
    return %c0_i32, %c0_i32_0 : i32, i32
  }
  func.func @transform_2(%arg0: i32, %arg1: i32) -> (i32, i32) {
    %c0_i32 = arith.constant 0 : i32
    %c0_i32_0 = arith.constant 0 : i32
    %c0_i32_1 = arith.constant 0 : i32
    return %c0_i32, %c0_i32_0 : i32, i32
  }
  func.func @transform_3(%arg0: i32, %arg1: i32) -> (i32, i32) {
    %c0_i32 = arith.constant 0 : i32
    %c0_i32_0 = arith.constant 0 : i32
    %c0_i32_1 = arith.constant 0 : i32
    return %c0_i32, %c0_i32_0 : i32, i32
  }
  func.func @transform_4(%arg0: i32, %arg1: i32) -> (i32, i32) {
    %c0_i32 = arith.constant 0 : i32
    %c0_i32_0 = arith.constant 0 : i32
    %c0_i32_1 = arith.constant 0 : i32
    return %c0_i32, %c0_i32_0 : i32, i32
  }
  func.func @transform_5(%arg0: i32, %arg1: i32) -> (i32, i32, i32) {
    %c0_i32 = arith.constant 0 : i32
    %c0_i32_0 = arith.constant 0 : i32
    return %arg0, %c0_i32, %arg1 : i32, i32, i32
  }
}

</mosaic_0001>

<llo_original>
// kernel: tpu_custom_call.1
$region0: #{tpu_custom_call.1}
  #allocation0 [shape = 'u32[]', space=smem, size = 0x4, offset = 0x4, fixed_abs, tag = 'smem constant byte address 0x4 - core index']
  #allocation1 [shape = 'u32[72,128]{1,0:T(1,128)}', space=vmem, size = 0x9000, scoped, tag = 'internal scratch']
  %s0 = inlined_call_operand.vmem [shape: f32[2,4,16], index: 0, kind: input, shape index: {}]
  %s1 = inlined_call_operand.vmem [shape: f32[32,4], index: 1, kind: input, shape index: {}]
  %s2 = inlined_call_operand.vmem [shape: f32[32,32], index: 2, kind: input, shape index: {}]
  %s3 = inlined_call_operand.vmem [shape: f32[8,32], index: 3, kind: input, shape index: {}]
  %s4 = inlined_call_operand.vmem [shape: f32[72,1], index: 4, kind: input, shape index: {}]
  %s5 = inlined_call_operand.hbm [shape: f32[2,8,16], index: 5, kind: output, shape index: {}]
  %s6 = sld [smem:[#allocation0]]
  $region53: #{tpu_custom_call.1} parent=0
    _
  %s8 = ssub.s32 1, %s6
  %s9 = scalar_select 0, %s8, %s6
  $region1: #{tpu_custom_call.1} parent=0
    #allocation2 [shape = 'u8[8192]{0}', space=vmem, size = 0x2000, scoped, tag = 'output window, operand 0']
    #allocation3 [shape = 's32[2]{0}', space=sflag, size = 0x8, scoped, tag = 'scoped memory for tpu_custom_call.1']
    %10 = vsyncpa [#allocation3], 0
    %s11 = scalar_lea.sflag [#allocation3], 1
    %12 = vsyncpa %s11, 0
    loop: start=0, step=1, limit=4
    $region2: #{tpu_custom_call.1} parent=1 // loop_pre_header
      _
    $region3: #{tpu_custom_call.1} parent=1 // loop_header
      %s14 = sphi 0, %s18
      %p15 = scmp.ge.s32.totalorder %s14, 4
      %s21 = sphi 0, %s33
      %s22 = sphi 0, %s29
      %s23 = sphi 0, %s21
      %s24 = sphi 0, %s22
      %s25 = sphi 0, %s23
      %s26 = sphi 0, %s24
      %s38 = sphi 0, %s40
      %s41 = sphi 0, %s38
      %s42 = sphi 0, %s41
      %s58 = sphi 0, %s42
      %s62 = sphi 0, %s62
      %s64 = sphi 0, %s62
      %s65 = sphi 0, %s64
      %s79 = sphi 0, %s65
      %s83 = sphi 0, %s83
      %s85 = sphi 0, %s83
      %s86 = sphi 0, %s85
      %s100 = sphi 0, %s86
      %s104 = sphi 0, %s104
      %s106 = sphi 0, %s104
      %s107 = sphi 0, %s106
      %s121 = sphi 0, %s107
      %s125 = sphi 0, %s125
      %s127 = sphi 0, %s125
      %s128 = sphi 0, %s127
      %s142 = sphi 0, %s128
      %s150 = sphi 0, %s152
      %s153 = sphi 0, %s150
      %s154 = sphi 0, %s153
      %s170 = sphi 0, %s154
    $region4: #{tpu_custom_call.1} parent=1 // loop_header_branch
      %17 = sbr.rel (%p15) target = $region8
    $region5: #{tpu_custom_call.1} parent=1 // loop_body
      %s19 = ssub.s32 %s14, 1
      %s20 = ssub.s32 %s14, 2
      %s27 = sadd.s32 1, %s22
      %p28 = scmp.ge.s32.totalorder %s27, 1
      %s29 = scalar_select %p28, 0, %s27
      %s30 = sadd.s32 1, %s21
      %s31 = scalar_select %p28, %s30, %s21
      %p32 = scmp.ge.s32.totalorder %s31, 2
      %s33 = scalar_select %p32, 0, %s31
      %s34 = ssub.s32 %s21, %s33
      %s35 = ssub.s32 %s22, %s29
      %s36 = sor.u32 %s34, %s35
      %p37 = scmp.eq.s32.totalorder %s36, 0
      %s39 = sadd.s32 %s38, 1
      %s40 = scalar_select %p37, %s38, %s39
      %p43 = pneg %p37
      %p44 = scmp.eq.s32.totalorder %s14, 1
      %p45 = por %p43, %p44
      %p46 = scmp.ne.s32.totalorder %s38, %s41
      %p47 = scmp.eq.s32.totalorder %s14, 0
      %p48 = por %p46, %p47
      %p49 = scmp.ne.s32.totalorder %s38, %s41
      %p50 = scmp.eq.s32.totalorder %s19, 1
      %p51 = por %p49, %p50
      %p52 = scmp.ne.s32.totalorder %s41, %s42
      %p53 = scmp.eq.s32.totalorder %s19, 0
      %p54 = por %p52, %p53
      %p55 = scmp.ne.s32.totalorder %s41, %s42
      %p56 = scmp.eq.s32.totalorder %s20, 1
      %p57 = por %p55, %p56
      %p59 = scmp.ne.s32.totalorder %s42, %s58
      %p60 = scmp.eq.s32.totalorder %s20, 0
      %p61 = por %p59, %p60
      %s63 = sadd.s32 %s62, 1
      %p66 = scmp.eq.s32.totalorder %s14, 1
      %p67 = scmp.ne.s32.totalorder %s62, %s64
      %p68 = scmp.eq.s32.totalorder %s14, 0
      %p69 = por %p67, %p68
      %p70 = scmp.ne.s32.totalorder %s62, %s64
      %p71 = scmp.eq.s32.totalorder %s19, 1
      %p72 = por %p70, %p71
      %p73 = scmp.ne.s32.totalorder %s64, %s65
      %p74 = scmp.eq.s32.totalorder %s19, 0
      %p75 = por %p73, %p74
      %p76 = scmp.ne.s32.totalorder %s64, %s65
      %p77 = scmp.eq.s32.totalorder %s20, 1
      %p78 = por %p76, %p77
      %p80 = scmp.ne.s32.totalorder %s65, %s79
      %p81 = scmp.eq.s32.totalorder %s20, 0
      %p82 = por %p80, %p81
      %s84 = sadd.s32 %s83, 1
      %p87 = scmp.eq.s32.totalorder %s14, 1
      %p88 = scmp.ne.s32.totalorder %s83, %s85
      %p89 = scmp.eq.s32.totalorder %s14, 0
      %p90 = por %p88, %p89
      %p91 = scmp.ne.s32.totalorder %s83, %s85
      %p92 = scmp.eq.s32.totalorder %s19, 1
      %p93 = por %p91, %p92
      %p94 = scmp.ne.s32.totalorder %s85, %s86
      %p95 = scmp.eq.s32.totalorder %s19, 0
      %p96 = por %p94, %p95
      %p97 = scmp.ne.s32.totalorder %s85, %s86
      %p98 = scmp.eq.s32.totalorder %s20, 1
      %p99 = por %p97, %p98
      %p101 = scmp.ne.s32.totalorder %s86, %s100
      %p102 = scmp.eq.s32.totalorder %s20, 0
      %p103 = por %p101, %p102
      %s105 = sadd.s32 %s104, 1
      %p108 = scmp.eq.s32.totalorder %s14, 1
      %p109 = scmp.ne.s32.totalorder %s104, %s106
      %p110 = scmp.eq.s32.totalorder %s14, 0
      %p111 = por %p109, %p110
      %p112 = scmp.ne.s32.totalorder %s104, %s106
      %p113 = scmp.eq.s32.totalorder %s19, 1
      %p114 = por %p112, %p113
      %p115 = scmp.ne.s32.totalorder %s106, %s107
      %p116 = scmp.eq.s32.totalorder %s19, 0
      %p117 = por %p115, %p116
      %p118 = scmp.ne.s32.totalorder %s106, %s107
      %p119 = scmp.eq.s32.totalorder %s20, 1
      %p120 = por %p118, %p119
      %p122 = scmp.ne.s32.totalorder %s107, %s121
      %p123 = scmp.eq.s32.totalorder %s20, 0
      %p124 = por %p122, %p123
      %s126 = sadd.s32 %s125, 1
      %p129 = scmp.eq.s32.totalorder %s14, 1
      %p130 = scmp.ne.s32.totalorder %s125, %s127
      %p131 = scmp.eq.s32.totalorder %s14, 0
      %p132 = por %p130, %p131
      %p133 = scmp.ne.s32.totalorder %s125, %s127
      %p134 = scmp.eq.s32.totalorder %s19, 1
      %p135 = por %p133, %p134
      %p136 = scmp.ne.s32.totalorder %s127, %s128
      %p137 = scmp.eq.s32.totalorder %s19, 0
      %p138 = por %p136, %p137
      %p139 = scmp.ne.s32.totalorder %s127, %s128
      %p140 = scmp.eq.s32.totalorder %s20, 1
      %p141 = por %p139, %p140
      %p143 = scmp.ne.s32.totalorder %s128, %s142
      %p144 = scmp.eq.s32.totalorder %s20, 0
      %p145 = por %p143, %p144
      %s146 = ssub.s32 %s21, %s33
      %s147 = ssub.s32 %s22, %s29
      %s148 = sor.u32 %s146, %s147
      %p149 = scmp.eq.s32.totalorder %s148, 0
      %s151 = sadd.s32 %s150, 1
      %s152 = scalar_select %p149, %s150, %s151
      %p155 = pneg %p149
      %p156 = scmp.eq.s32.totalorder %s14, 1
      %p157 = por %p155, %p156
      %p158 = scmp.ne.s32.totalorder %s150, %s153
      %p159 = scmp.eq.s32.totalorder %s14, 0
      %p160 = por %p158, %p159
      %p161 = scmp.ne.s32.totalorder %s150, %s153
      %p162 = scmp.eq.s32.totalorder %s19, 1
      %p163 = por %p161, %p162
      %p164 = scmp.ne.s32.totalorder %s153, %s154
      %p165 = scmp.eq.s32.totalorder %s19, 0
      %p166 = por %p164, %p165
      %p167 = scmp.ne.s32.totalorder %s153, %s154
      %p168 = scmp.eq.s32.totalorder %s20, 1
      %p169 = por %p167, %p168
      %p171 = scmp.ne.s32.totalorder %s154, %s170
      %p172 = scmp.eq.s32.totalorder %s20, 0
      %p173 = por %p171, %p172
      %p174 = scmp.le.s32.totalorder 1, %s14
      %p175 = scmp.lt.s32.totalorder %s14, 3
      %p176 = pnand %p174, %p175
      %p177 = pneg %p176
      // Predicated region
      $region9: #{tpu_custom_call.1} parent=5 // pred_check
        _
      $region10: #{tpu_custom_call.1} parent=5 // pred_check_branch
        %179 = sbr.rel (%p176) target = $region12
      $region11: #{tpu_custom_call.1} parent=5 // pred_region
        %s180 = ssub.s32 %s14, 1
        // Predicated region
        $region13: #{tpu_custom_call.1} parent=11 // pred_check
          %p181 = pneg %p75
        $region14: #{tpu_custom_call.1} parent=11 // pred_check_branch
          %183 = sbr.rel (%p181) target = $region16
        $region15: #{tpu_custom_call.1} parent=11 // pred_region
          _
        $region16: #{tpu_custom_call.1} parent=11 // pred_fallthru
          _
        // Predicated region
        $region17: #{tpu_custom_call.1} parent=11 // pred_check
          %p184 = pneg %p96
        $region18: #{tpu_custom_call.1} parent=11 // pred_check_branch
          %186 = sbr.rel (%p184) target = $region20
        $region19: #{tpu_custom_call.1} parent=11 // pred_region
          _
        $region20: #{tpu_custom_call.1} parent=11 // pred_fallthru
          _
        // Predicated region
        $region21: #{tpu_custom_call.1} parent=11 // pred_check
          %p187 = pneg %p117
        $region22: #{tpu_custom_call.1} parent=11 // pred_check_branch
          %189 = sbr.rel (%p187) target = $region24
        $region23: #{tpu_custom_call.1} parent=11 // pred_region
          _
        $region24: #{tpu_custom_call.1} parent=11 // pred_fallthru
          _
        // Predicated region
        $region25: #{tpu_custom_call.1} parent=11 // pred_check
          %p190 = pneg %p138
        $region26: #{tpu_custom_call.1} parent=11 // pred_check_branch
          %192 = sbr.rel (%p190) target = $region28
        $region27: #{tpu_custom_call.1} parent=11 // pred_region
          _
        $region28: #{tpu_custom_call.1} parent=11 // pred_fallthru
          _
      $region12: #{tpu_custom_call.1} parent=5 // pred_fallthru
        _
      %p193 = scmp.lt.s32.totalorder %s14, 2
      // Predicated region
      $region29: #{tpu_custom_call.1} parent=5 // pred_check
        %p194 = pneg %p193
      $region30: #{tpu_custom_call.1} parent=5 // pred_check_branch
        %196 = sbr.rel (%p194) target = $region32
      $region31: #{tpu_custom_call.1} parent=5 // pred_region
        // Predicated region
        $region33: #{tpu_custom_call.1} parent=31 // pred_check
          %p197 = pneg %p48
        $region34: #{tpu_custom_call.1} parent=31 // pred_check_branch
          %199 = sbr.rel (%p197) target = $region36
        $region35: #{tpu_custom_call.1} parent=31 // pred_region
          %p200 = scmp.lt.s32.totalorder %s21, 1
          %s201 = scalar_select %p200, %s21, 1
          %p202 = scmp.lt.s32.totalorder %s22, 0
          %s203 = scalar_select %p202, %s22, 0
          %s204 = sadd.s32 %s203, %s201
          %s205 = smul.addr %s204, 4
          %s206 = scalar_lea.vmem %s0, %s205
        $region36: #{tpu_custom_call.1} parent=31 // pred_fallthru
          _
      $region32: #{tpu_custom_call.1} parent=5 // pred_fallthru
        _
      %p207 = scmp.le.s32.totalorder 1, %s14
      %p208 = scmp.lt.s32.totalorder %s14, 3
      %p209 = pnand %p207, %p208
      %p210 = pneg %p209
      // Predicated region
      $region37: #{tpu_custom_call.1} parent=5 // pred_check
        _
      $region38: #{tpu_custom_call.1} parent=5 // pred_check_branch
        %212 = sbr.rel (%p209) target = $region40
      $region39: #{tpu_custom_call.1} parent=5 // pred_region
        %s213 = ssub.s32 %s14, 1
        %p214 = scmp.lt.s32.totalorder %s23, 1
        %s215 = scalar_select %p214, %s23, 1
        %p216 = scmp.lt.s32.totalorder %s24, 0
        %s217 = scalar_select %p216, %s24, 0
        %s218 = sadd.s32 %s217, %s215
        %s219 = smul.addr %s218, 4
        %s220 = scalar_lea.vmem %s0, %s219
        %p221 = pneg %p54
        %p222 = pneg %p51
        %p223 = pneg %p75
        %p224 = pneg %p72
        %p225 = pneg %p96
        %p226 = pneg %p93
        %p227 = pneg %p117
        %p228 = pneg %p114
        %p229 = pneg %p138
        %p230 = pneg %p135
        %p231 = pneg %p166
        %p232 = pneg %p163
        %s233 = sand.u32 %s153, 1
        %s234 = scalar_lea.sflag [#allocation3], %s233
        %s235 = sand.u32 %s153, 1
        %s236 = smul.addr %s235, 8
        %s237 = scalar_lea.vmem [#allocation2], %s236
        %p238 = scmp.lt.s32.totalorder %s23, 1
        %s239 = scalar_select %p238, %s23, 1
        %p240 = scmp.lt.s32.totalorder %s24, 0
        %s241 = scalar_select %p240, %s24, 0
        %s242 = sadd.s32 %s241, %s239
        %s243 = smul.addr %s242, 4
        %s244 = scalar_lea.vmem %s0, %s243
        %v245 = vld [vmem:[%s244] sm:$0xf]
        %v246 = vld [vmem:[%s1] sm:$0xff]
        %v247 = vld [vmem:[%s1 + $0x8] sm:$0xff]
        %v248 = vld [vmem:[%s1 + $0x10] sm:$0xff]
        %v249 = vld [vmem:[%s1 + $0x18] sm:$0xff]
        %v250 = vld [vmem:[%s4] sm:$0xff]
        %v251 = vld [vmem:[%s4 + $0x8] sm:$0xff]
        %v252 = vld [vmem:[%s4 + $0x10] sm:$0xff]
        %v253 = vld [vmem:[%s4 + $0x18] sm:$0xff]
        %255 = vset.pattern.permute.xlu0 0
        %256 = vperm.xlu0 %255, %v246
        %v257 = vpop.permute.xlu0 %256
        %260 = vset.pattern.permute.xlu0 0
        %261 = vperm.xlu0 %260, %v247
        %v262 = vpop.permute.xlu0 %261
        %265 = vset.pattern.permute.xlu0 0
        %266 = vperm.xlu0 %265, %v248
        %v267 = vpop.permute.xlu0 %266
        %270 = vset.pattern.permute.xlu0 0
        %271 = vperm.xlu0 %270, %v249
        %v272 = vpop.permute.xlu0 %271
        %v274 = vperm.slane %v245, 0
        %v275 = vmul.f32 %v257, %v274
        %v276 = vmul.f32 %v262, %v274
        %v277 = vmul.f32 %v267, %v274
        %v278 = vmul.f32 %v272, %v274
        %279 = vset.pattern.permute.xlu0 1
        %280 = vperm.xlu0 %279, %v246
        %v281 = vpop.permute.xlu0 %280
        %283 = vset.pattern.permute.xlu0 1
        %284 = vperm.xlu0 %283, %v247
        %v285 = vpop.permute.xlu0 %284
        %287 = vset.pattern.permute.xlu0 1
        %288 = vperm.xlu0 %287, %v248
        %v289 = vpop.permute.xlu0 %288
        %291 = vset.pattern.permute.xlu0 1
        %292 = vperm.xlu0 %291, %v249
        %v293 = vpop.permute.xlu0 %292
        %v295 = vperm.slane %v245, 1
        %v296 = vmul.f32 %v281, %v295
        %v297 = vmul.f32 %v285, %v295
        %v298 = vmul.f32 %v289, %v295
        %v299 = vmul.f32 %v293, %v295
        %v300 = vadd.f32 %v275, %v296
        %v301 = vadd.f32 %v276, %v297
        %v302 = vadd.f32 %v277, %v298
        %v303 = vadd.f32 %v278, %v299
        %304 = vset.pattern.permute.xlu0 2
        %305 = vperm.xlu0 %304, %v246
        %v306 = vpop.permute.xlu0 %305
        %308 = vset.pattern.permute.xlu0 2
        %309 = vperm.xlu0 %308, %v247
        %v310 = vpop.permute.xlu0 %309
        %312 = vset.pattern.permute.xlu0 2
        %313 = vperm.xlu0 %312, %v248
        %v314 = vpop.permute.xlu0 %313
        %316 = vset.pattern.permute.xlu0 2
        %317 = vperm.xlu0 %316, %v249
        %v318 = vpop.permute.xlu0 %317
        %v320 = vperm.slane %v245, 2
        %v321 = vmul.f32 %v306, %v320
        %v322 = vmul.f32 %v310, %v320
        %v323 = vmul.f32 %v314, %v320
        %v324 = vmul.f32 %v318, %v320
        %v325 = vadd.f32 %v300, %v321
        %v326 = vadd.f32 %v301, %v322
        %v327 = vadd.f32 %v302, %v323
        %v328 = vadd.f32 %v303, %v324
        %329 = vset.pattern.permute.xlu0 3
        %330 = vperm.xlu0 %329, %v246
        %v331 = vpop.permute.xlu0 %330
        %333 = vset.pattern.permute.xlu0 3
        %334 = vperm.xlu0 %333, %v247
        %v335 = vpop.permute.xlu0 %334
        %337 = vset.pattern.permute.xlu0 3
        %338 = vperm.xlu0 %337, %v248
        %v339 = vpop.permute.xlu0 %338
        %341 = vset.pattern.permute.xlu0 3
        %342 = vperm.xlu0 %341, %v249
        %v343 = vpop.permute.xlu0 %342
        %v345 = vperm.slane %v245, 3
        %v346 = vmul.f32 %v331, %v345
        %v347 = vmul.f32 %v335, %v345
        %v348 = vmul.f32 %v339, %v345
        %v349 = vmul.f32 %v343, %v345
        %v350 = vadd.f32 %v325, %v346
        %v351 = vadd.f32 %v326, %v347
        %v352 = vadd.f32 %v327, %v348
        %v353 = vadd.f32 %v328, %v349
        %355 = vset.pattern.permute.xlu0 0
        %356 = vperm.xlu0 %355, %v250
        %v357 = vpop.permute.xlu0 %356
        %360 = vset.pattern.permute.xlu0 0
        %361 = vperm.xlu0 %360, %v251
        %v362 = vpop.permute.xlu0 %361
        %365 = vset.pattern.permute.xlu0 0
        %366 = vperm.xlu0 %365, %v252
        %v367 = vpop.permute.xlu0 %366
        %370 = vset.pattern.permute.xlu0 0
        %371 = vperm.xlu0 %370, %v253
        %v372 = vpop.permute.xlu0 %371
        %v374 = vadd.f32 %v350, %v357
        %v375 = vadd.f32 %v351, %v362
        %v376 = vadd.f32 %v352, %v367
        %v377 = vadd.f32 %v353, %v372
        %v378 = vmax.f32 %v374, 0.0
        %v379 = vmax.f32 %v375, 0.0
        %v380 = vmax.f32 %v376, 0.0
        %v381 = vmax.f32 %v377, 0.0
        %v382 = vld [vmem:[%s2] sm:$0xff]
        %v383 = vld [vmem:[%s2 + $0x8] sm:$0xff]
        %v384 = vld [vmem:[%s2 + $0x10] sm:$0xff]
        %v385 = vld [vmem:[%s2 + $0x18] sm:$0xff]
        %v386 = vld [vmem:[%s4 + $0x20] sm:$0xff]
        %v387 = vld [vmem:[%s4 + $0x28] sm:$0xff]
        %v388 = vld [vmem:[%s4 + $0x30] sm:$0xff]
        %v389 = vld [vmem:[%s4 + $0x38] sm:$0xff]
        %391 = vset.pattern.permute.xlu0 0
        %392 = vperm.xlu0 %391, %v386
        %v393 = vpop.permute.xlu0 %392
        %396 = vset.pattern.permute.xlu0 0
        %397 = vperm.xlu0 %396, %v387
        %v398 = vpop.permute.xlu0 %397
        %401 = vset.pattern.permute.xlu0 0
        %402 = vperm.xlu0 %401, %v388
        %v403 = vpop.permute.xlu0 %402
        %406 = vset.pattern.permute.xlu0 0
        %407 = vperm.xlu0 %406, %v389
        %v408 = vpop.permute.xlu0 %407
        %vm410 = vcmask 261120
        %v412 = vsel %vm410, %v382, 0
        %v415 = vsel %vm410, %v383, 0
        %v418 = vsel %vm410, %v384, 0
        %v421 = vsel %vm410, %v385, 0
        %423 = vmatpush.msra.mxu0 0.0
        %424 = vmatpush.msra.mxu0 0.0
        %425 = vmatpush.msra.mxu0 0.0
        %426 = vmatpush.msra.mxu0 0.0
        %427 = vmatpush.msra.mxu0 0.0
        %428 = vmatpush.msra.mxu0 0.0
        %429 = vmatpush.msra.mxu0 0.0
        %430 = vmatpush.msra.mxu0 0.0
        %431 = vmatpush.msra.mxu0 0.0
        %432 = vmatpush.msra.mxu0 0.0
        %433 = vmatpush.msra.mxu0 0.0
        %434 = vmatpush.msra.mxu0 0.0
        %435 = vmatpush.msra.mxu0 %v381
        %436 = vmatpush.msra.mxu0 %v380
        %437 = vmatpush.msra.mxu0 %v379
        %438 = vmatpush.msra.mxu0 %v378
        %439 = vmatmul.f32.gmra.mxu0 %v412
        %v440 = vpop.f32.mrf.mxu0
        %v441 = vadd.f32 %v393, %v440
        %442 = vmatmul.f32.gmra.mxu0 %v415
        %v443 = vpop.f32.mrf.mxu0
        %v444 = vadd.f32 %v398, %v443
        %445 = vmatmul.f32.gmra.mxu0 %v418
        %v446 = vpop.f32.mrf.mxu0
        %v447 = vadd.f32 %v403, %v446
        %448 = vmatmul.f32.gmra.mxu0 %v421
        %v449 = vpop.f32.mrf.mxu0
        %v450 = vadd.f32 %v408, %v449
        %451 = vdwg.mxu0
        %v452 = vmax.f32 %v441, 0.0
        %v453 = vmax.f32 %v444, 0.0
        %v454 = vmax.f32 %v447, 0.0
        %v455 = vmax.f32 %v450, 0.0
        %v456 = vld [vmem:[%s3] sm:$0xff]
        %v457 = vld [vmem:[%s4 + $0x40] sm:$0xff]
        %459 = vset.pattern.permute.xlu0 0
        %460 = vperm.xlu0 %459, %v457
        %v461 = vpop.permute.xlu0 %460
        %v464 = vsel %vm410, %v456, 0
        %466 = vmatpush.msra.mxu0 0.0
        %467 = vmatpush.msra.mxu0 0.0
        %468 = vmatpush.msra.mxu0 0.0
        %469 = vmatpush.msra.mxu0 0.0
        %470 = vmatpush.msra.mxu0 0.0
        %471 = vmatpush.msra.mxu0 0.0
        %472 = vmatpush.msra.mxu0 0.0
        %473 = vmatpush.msra.mxu0 0.0
        %474 = vmatpush.msra.mxu0 0.0
        %475 = vmatpush.msra.mxu0 0.0
        %476 = vmatpush.msra.mxu0 0.0
        %477 = vmatpush.msra.mxu0 0.0
        %478 = vmatpush.msra.mxu0 %v455
        %479 = vmatpush.msra.mxu0 %v454
        %480 = vmatpush.msra.mxu0 %v453
        %481 = vmatpush.msra.mxu0 %v452
        %482 = vmatmul.f32.gmra.mxu0 %v464
        %v483 = vpop.f32.mrf.mxu0
        %v484 = vadd.f32 %v461, %v483
        %485 = vdwg.mxu0
        %vm486 = vcmask 130048
        %487 = vst.msk [vmem:[%s237] sm:$0xff] %vm486, %v484
        %s488 = sand.u32 %s153, 1
        %s489 = scalar_lea.sflag [#allocation3], %s488
        %s490 = sand.u32 %s153, 1
        %s491 = smul.addr %s490, 8
        %s492 = scalar_lea.vmem [#allocation2], %s491
        // Predicated region
        $region41: #{tpu_custom_call.1} parent=39 // pred_check
          %p493 = pneg %p163
        $region42: #{tpu_custom_call.1} parent=39 // pred_check_branch
          %495 = sbr.rel (%p493) target = $region44
        $region43: #{tpu_custom_call.1} parent=39 // pred_region
          %497 = vsyncadd %s489, 0
          %s498 = sadd.s32 %s24, %s23
          %s499 = smul.addr %s498, 8
          %s500 = scalar_lea.hbm %s5, %s499
          %s502 = sshll.u32 %s492, 4
          %s503 = int_to_ptr.vmem [resolvable:$true] %s502
          %s504 = sshll.u32 %s500, 4
          %s505 = int_to_ptr.hbm [resolvable:$true] %s504
          %507 = dma.vmem_to_hbm [thread:$0]  %s503, 128, %s505, %s489
        $region44: #{tpu_custom_call.1} parent=39 // pred_fallthru
          _
      $region40: #{tpu_custom_call.1} parent=5 // pred_fallthru
        _
      %p508 = scmp.le.s32.totalorder 2, %s14
      // Predicated region
      $region45: #{tpu_custom_call.1} parent=5 // pred_check
        %p509 = pneg %p508
      $region46: #{tpu_custom_call.1} parent=5 // pred_check_branch
        %511 = sbr.rel (%p509) target = $region48
      $region47: #{tpu_custom_call.1} parent=5 // pred_region
        %s512 = ssub.s32 %s14, 2
        // Predicated region
        $region49: #{tpu_custom_call.1} parent=47 // pred_check
          %p513 = pneg %p169
        $region50: #{tpu_custom_call.1} parent=47 // pred_check_branch
          %515 = sbr.rel (%p513) target = $region52
        $region51: #{tpu_custom_call.1} parent=47 // pred_region
          %s516 = sand.u32 %s154, 1
          %s517 = scalar_lea.sflag [#allocation3], %s516
          %s518 = sand.u32 %s154, 1
          %s519 = smul.addr %s518, 8
          %s520 = scalar_lea.vmem [#allocation2], %s519
          %522 = dma.done %s517, 128
        $region52: #{tpu_custom_call.1} parent=47 // pred_fallthru
          _
      $region48: #{tpu_custom_call.1} parent=5 // pred_fallthru
        _
    $region6: #{tpu_custom_call.1} parent=1 // loop_footer
      %s18 = sadd.s32 1, %s14
    $region7: #{tpu_custom_call.1} parent=1 // loop_footer_branch
      %13 = sbr.rel target = $region3
    $region8: #{tpu_custom_call.1} parent=1 // loop_exit
      _
    %523 = vsyncpa [#allocation3], 1
    %s524 = scalar_lea.sflag [#allocation3], 1
    %525 = vsyncpa %s524, 1

</llo_original>
